<compile_context>
chip_gen: v7x
topology: tpu7x:2x2x1
jax: 0.10.0
libtpu: 0.0.40
codegen_flags: <defaults>
</compile_context>

<pallas_src>
import functools

import numpy as np
import jax
import jax.numpy as jnp
from jax import lax
from jax.experimental import pallas as pl
from jax.experimental.pallas import tpu as pltpu

REP_THR = 0.7                       # NonMaxSuppression(rep_thr=0.7)
LANE = 128                          # lane width
ROW_TILE = 32                       # int8 sublane packing -> row tiles multiple of 32
VMEM_WORKSET_BUDGET = 16 * 1024 * 1024   # double-buffered per-step bytes target
VMEM_LIMIT_BYTES = 32 * 1024 * 1024      # explicit scoped-VMEM limit (all gens)


def _round_up(x, m):
    return (x + m - 1) // m * m


def _roll(x, shift, axis):
    # pltpu.roll requires a non-negative shift; negative shifts == size - |shift|.
    return pltpu.roll(x, shift=shift % x.shape[axis], axis=axis)


def _nms_kernel(halo_ref, rel_ref, rep_ref, maxima_ref, scores_ref,
                *, logical_h, logical_w, rep_thr):
    rep = rep_ref[...]                       # (tile_h, wp)
    rel = rel_ref[...]                       # (tile_h, wp)
    halo = halo_ref[0]                       # (2, wp): row above / row below tile
    th, wp = rep.shape
    neg_inf = jnp.float32(-jnp.inf)

    rows = lax.broadcasted_iota(jnp.int32, (th, 1), 0)

    # Rows >= H (only when the last row block over-hangs the image) contain
    # unspecified data; force them to -inf so they cannot suppress a maximum
    # on the bottom image row.  Statically skipped when H % tile_h == 0.
    if logical_h % th != 0:
        row_g = rows + pl.program_id(0) * th
        rep = jnp.where(row_g < logical_h, rep, neg_inf)

    # Column validity at the *logical* image border.  Columns >= W (lane
    # over-hang) are unspecified, so both the wrap into column 0 and the right
    # neighbour of column W-1 must be masked to -inf.
    cols = lax.broadcasted_iota(jnp.int32, (1, wp), 1)
    has_left = cols >= 1
    has_right = cols <= logical_w - 2

    def hmax3(x):
        left = jnp.where(has_left, _roll(x, 1, 1), neg_inf)
        right = jnp.where(has_right, _roll(x, -1, 1), neg_inf)
        return jnp.maximum(x, jnp.maximum(left, right))

    h = hmax3(rep)         # (tile_h, wp)
    h_halo = hmax3(halo)   # (2, wp)

    # Vertical 3-max; substitute the halo rows at the tile boundary.
    up = jnp.where(rows == 0, h_halo[0:1, :], _roll(h, 1, 0))
    down = jnp.where(rows == th - 1, h_halo[1:2, :], _roll(h, -1, 0))
    mx = jnp.maximum(h, jnp.maximum(up, down))

    # maxima = (rep == maxpool3x3(rep)) & (rep >= rep_thr)
    maxima = (rep == mx) & (rep >= rep_thr)
    maxima_ref[...] = maxima.astype(jnp.int8)

    # score map: reliability * repeatability (gathered at keypoints on host).
    scores_ref[...] = (rel * rep).astype(scores_ref.dtype)


@functools.partial(jax.jit, static_argnames=("tile_h", "scores_dtype"))
def nms_and_scores(reliability, repeatability, *, tile_h=256,
                   scores_dtype=jnp.float32):
    """reliability, repeatability: (1, 1, H, W) float32 heatmaps (NCHW).

    Returns (maxima_int8[H, W], scores[H, W]) at the logical image shape
    (no device-side padding / cropping).
    """
    rel = reliability[0, 0].astype(jnp.float32)
    rep = repeatability[0, 0].astype(jnp.float32)
    H, W = rep.shape

    wp = _round_up(W, LANE)

    # Row tile: multiple of 32 (int8 sublane tile), capped so the
    # double-buffered per-step working set fits the VMEM budget.
    bytes_per_row = 2 * (4 + 4 + 4 + 1) * wp
    cap = max(ROW_TILE,
              (VMEM_WORKSET_BUDGET // bytes_per_row) // ROW_TILE * ROW_TILE)
    tile_h = max(ROW_TILE, min(_round_up(tile_h, ROW_TILE), cap,
                               _round_up(H, ROW_TILE)))
    nb = pl.cdiv(H, tile_h)

    neg_inf = float("-inf")
    # Halo rows: the image row just above / just below each row tile
    # (-inf beyond the image).  Tiny (nb, 2, wp) side input; the big maps
    # themselves are NOT padded.
    idx_above = np.arange(nb) * tile_h - 1
    idx_below = (np.arange(nb) + 1) * tile_h
    above = jnp.where((idx_above >= 0)[:, None],
                      rep[np.clip(idx_above, 0, H - 1)], neg_inf)
    below = jnp.where((idx_below < H)[:, None],
                      rep[np.clip(idx_below, 0, H - 1)], neg_inf)
    halo = jnp.stack([above, below], axis=1)                       # (nb, 2, W)
    if wp != W:
        halo = jnp.pad(halo, ((0, 0), (0, 0), (0, wp - W)),
                       constant_values=neg_inf)

    kernel = functools.partial(_nms_kernel, logical_h=H, logical_w=W,
                               rep_thr=REP_THR)

    maxima, scores = pl.pallas_call(
        kernel,
        out_shape=(
            jax.ShapeDtypeStruct((H, W), jnp.int8),
            jax.ShapeDtypeStruct((H, W), scores_dtype),
        ),
        grid_spec=pl.GridSpec(
            grid=(nb,),
            in_specs=[
                pl.BlockSpec((1, 2, wp), lambda i: (i, 0, 0)),     # halo rows
                pl.BlockSpec((tile_h, wp), lambda i: (i, 0)),      # reliability
                pl.BlockSpec((tile_h, wp), lambda i: (i, 0)),      # repeatability
            ],
            out_specs=(
                pl.BlockSpec((tile_h, wp), lambda i: (i, 0)),      # maxima (int8)
                pl.BlockSpec((tile_h, wp), lambda i: (i, 0)),      # scores
            ),
        ),
        compiler_params=pltpu.CompilerParams(
            dimension_semantics=("parallel",),
            vmem_limit_bytes=VMEM_LIMIT_BYTES,
        ),
        cost_estimate=pl.CostEstimate(
            flops=12 * H * W,
            transcendentals=0,
            bytes_accessed=(4 + 4 + 4 + 1) * H * W + 2 * 4 * nb * wp,
        ),
    )(halo, rel, rep)

    return maxima, scores


def extract_keypoints_host(reliability, repeatability, *, tile_h=256):
    """Mirrors NonMaxSuppression.forward + score gathering of extract_multiscale.

    Returns (y, x) keypoint indices and scores c*q.  The nonzero() extraction
    is dynamic-shape, so it runs on host after the Pallas kernel.
    """
    maxima_i8, score_map = nms_and_scores(reliability, repeatability,
                                          tile_h=tile_h)
    maxima = np.asarray(jax.device_get(maxima_i8)) != 0
    score_map = np.asarray(jax.device_get(score_map))
    y, x = np.nonzero(maxima)   # == maxima.nonzero().t()[2:4] on the squeezed map
    scores = score_map[y, x]
    return (y, x), scores, maxima, score_map


def _reference(reliability, repeatability, rep_thr=REP_THR):
    """Pure numpy reference (MaxPool2d(3,1,1) with -inf padding + threshold)."""
    rel = np.asarray(reliability)[0, 0].astype(np.float32)
    rep = np.asarray(repeatability)[0, 0].astype(np.float32)
    H, W = rep.shape
    padded = np.full((H + 2, W + 2), -np.inf, dtype=np.float32)
    padded[1:-1, 1:-1] = rep
    mx = np.full_like(rep, -np.inf)
    for dy in range(3):
        for dx in range(3):
            mx = np.maximum(mx, padded[dy:dy + H, dx:dx + W])
    maxima = (rep == mx) & (rep >= np.float32(rep_thr))
    return maxima, rel * rep


if __name__ == "__main__":
    key = jax.random.PRNGKey(0)

    # Case 1: ragged H and W -> last-row-tile masking + lane over-hang + halo.
    # Case 2: fully aligned, W == wp (tests the logical-edge column masks).
    # Case 3: single row block (nb == 1) with lane over-hang.
    cases = [((40, 200), 32), ((64, 128), 32), ((64, 200), 64)]

    ok = True
    for (H, W), th in cases:
        key, k1, k2 = jax.random.split(key, 3)
        reliability = jax.random.uniform(k1, (1, 1, H, W), dtype=jnp.float32)
        repeatability = jax.random.uniform(k2, (1, 1, H, W), dtype=jnp.float32)

        maxima_dev, scores_dev = nms_and_scores(reliability, repeatability,
                                                tile_h=th)
        jax.block_until_ready((maxima_dev, scores_dev))

        (y, x), scores, maxima, score_map = extract_keypoints_host(
            reliability, repeatability, tile_h=th)

        ref_maxima, ref_scores = _reference(reliability, repeatability)
        ok &= bool(np.array_equal(maxima, ref_maxima))
        ok &= bool(np.allclose(score_map, ref_scores, rtol=1e-6, atol=1e-6))
        ok &= bool(np.allclose(scores, ref_scores[ref_maxima],
                               rtol=1e-6, atol=1e-6))

    assert ok, "mismatch vs numpy reference"
    print("KERNEL_OK")
</pallas_src>

<mosaic_0001>
module attributes {stable_mosaic.version = 11 : i64} {
  func.func @_nms_kernel(%arg0: i32, %arg1: memref<1x2x256xf32, #tpu.memory_space<vmem>>, %arg2: memref<32x256xf32, #tpu.memory_space<vmem>>, %arg3: memref<32x256xf32, #tpu.memory_space<vmem>>, %arg4: memref<32x256xi8, #tpu.memory_space<vmem>>, %arg5: memref<32x256xf32, #tpu.memory_space<vmem>>) attributes {dimension_semantics = [#tpu.dimension_semantics<parallel>], iteration_bounds = array<i64: 2>, scalar_prefetch = 0 : i64, scratch_operands = 0 : i64, tpu.core_type = #tpu.core_type<tc>, window_params = [{transform_indices = @transform_0, window_bounds = array<i64: 1, 2, 256>}, {transform_indices = @transform_1, window_bounds = array<i64: 32, 256>}, {transform_indices = @transform_2, window_bounds = array<i64: 32, 256>}, {transform_indices = @transform_3, window_bounds = array<i64: 32, 256>}, {transform_indices = @transform_4, window_bounds = array<i64: 32, 256>}]} {
    %c0 = arith.constant 0 : index
    %c0_0 = arith.constant 0 : index
    %0 = vector.load %arg3[%c0, %c0_0] : memref<32x256xf32, #tpu.memory_space<vmem>>, vector<32x256xf32>
    %c0_1 = arith.constant 0 : index
    %c0_2 = arith.constant 0 : index
    %1 = vector.load %arg2[%c0_1, %c0_2] : memref<32x256xf32, #tpu.memory_space<vmem>>, vector<32x256xf32>
    %c0_3 = arith.constant 0 : index
    %c0_4 = arith.constant 0 : index
    %c0_5 = arith.constant 0 : index
    %2 = vector.load %arg1[%c0_3, %c0_4, %c0_5] : memref<1x2x256xf32, #tpu.memory_space<vmem>>, vector<1x2x256xf32>
    %3 = vector.shape_cast %2 : vector<1x2x256xf32> to vector<2x256xf32>
    %4 = tpu.iota {dimensions = array<i32: 0>} : vector<32x1xi32>
    %c32_i32 = arith.constant 32 : i32
    %5 = arith.muli %arg0, %c32_i32 : i32
    %6 = vector.broadcast %5 : i32 to vector<32x1xi32>
    %7 = arith.addi %4, %6 : vector<32x1xi32>
    %c40_i32 = arith.constant 40 : i32
    %8 = vector.broadcast %c40_i32 : i32 to vector<32x1xi32>
    %9 = arith.cmpi slt, %7, %8 : vector<32x1xi32>
    %cst = arith.constant 0xFF800000 : f32
    %10 = vector.shape_cast %9 : vector<32x1xi1> to vector<32x1xi1>
    %11 = vector.broadcast %10 : vector<32x1xi1> to vector<32x256xi1>
    %12 = vector.broadcast %cst : f32 to vector<32x256xf32>
    %13 = arith.select %11, %0, %12 : vector<32x256xi1>, vector<32x256xf32>
    %14 = tpu.iota {dimensions = array<i32: 1>} : vector<1x256xi32>
    %c1_i32 = arith.constant 1 : i32
    %15 = vector.broadcast %c1_i32 : i32 to vector<1x256xi32>
    %16 = arith.cmpi sge, %14, %15 : vector<1x256xi32>
    %c198_i32 = arith.constant 198 : i32
    %17 = vector.broadcast %c198_i32 : i32 to vector<1x256xi32>
    %18 = arith.cmpi sle, %14, %17 : vector<1x256xi32>
    %c1_i32_6 = arith.constant 1 : i32
    %19 = tpu.dynamic_rotate %13 by %c1_i32_6 dim 1 : vector<32x256xf32>, i32 -> vector<32x256xf32>
    %cst_7 = arith.constant 0xFF800000 : f32
    %20 = vector.shape_cast %16 : vector<1x256xi1> to vector<1x256xi1>
    %21 = vector.broadcast %20 : vector<1x256xi1> to vector<32x256xi1>
    %22 = vector.broadcast %cst_7 : f32 to vector<32x256xf32>
    %23 = arith.select %21, %19, %22 : vector<32x256xi1>, vector<32x256xf32>
    %c255_i32 = arith.constant 255 : i32
    %24 = tpu.dynamic_rotate %13 by %c255_i32 dim 1 : vector<32x256xf32>, i32 -> vector<32x256xf32>
    %cst_8 = arith.constant 0xFF800000 : f32
    %25 = vector.shape_cast %18 : vector<1x256xi1> to vector<1x256xi1>
    %26 = vector.broadcast %25 : vector<1x256xi1> to vector<32x256xi1>
    %27 = vector.broadcast %cst_8 : f32 to vector<32x256xf32>
    %28 = arith.select %26, %24, %27 : vector<32x256xi1>, vector<32x256xf32>
    %29 = arith.maximumf %23, %28 : vector<32x256xf32>
    %30 = arith.maximumf %13, %29 : vector<32x256xf32>
    %c1_i32_9 = arith.constant 1 : i32
    %31 = tpu.dynamic_rotate %3 by %c1_i32_9 dim 1 : vector<2x256xf32>, i32 -> vector<2x256xf32>
    %cst_10 = arith.constant 0xFF800000 : f32
    %32 = vector.shape_cast %16 : vector<1x256xi1> to vector<1x256xi1>
    %33 = vector.broadcast %32 : vector<1x256xi1> to vector<2x256xi1>
    %34 = vector.broadcast %cst_10 : f32 to vector<2x256xf32>
    %35 = arith.select %33, %31, %34 : vector<2x256xi1>, vector<2x256xf32>
    %c255_i32_11 = arith.constant 255 : i32
    %36 = tpu.dynamic_rotate %3 by %c255_i32_11 dim 1 : vector<2x256xf32>, i32 -> vector<2x256xf32>
    %cst_12 = arith.constant 0xFF800000 : f32
    %37 = vector.shape_cast %18 : vector<1x256xi1> to vector<1x256xi1>
    %38 = vector.broadcast %37 : vector<1x256xi1> to vector<2x256xi1>
    %39 = vector.broadcast %cst_12 : f32 to vector<2x256xf32>
    %40 = arith.select %38, %36, %39 : vector<2x256xi1>, vector<2x256xf32>
    %41 = arith.maximumf %35, %40 : vector<2x256xf32>
    %42 = arith.maximumf %3, %41 : vector<2x256xf32>
    %c0_i32 = arith.constant 0 : i32
    %43 = vector.broadcast %c0_i32 : i32 to vector<32x1xi32>
    %44 = arith.cmpi eq, %4, %43 : vector<32x1xi32>
    %45 = vector.extract_strided_slice %42 {offsets = [0, 0], sizes = [1, 256], strides = [1, 1]} : vector<2x256xf32> to vector<1x256xf32>
    %c1_i32_13 = arith.constant 1 : i32
    %46 = tpu.dynamic_rotate %30 by %c1_i32_13 dim 0 : vector<32x256xf32>, i32 -> vector<32x256xf32>
    %47 = vector.shape_cast %44 : vector<32x1xi1> to vector<32x1xi1>
    %48 = vector.broadcast %47 : vector<32x1xi1> to vector<32x256xi1>
    %49 = vector.shape_cast %45 : vector<1x256xf32> to vector<1x256xf32>
    %50 = vector.broadcast %49 : vector<1x256xf32> to vector<32x256xf32>
    %51 = arith.select %48, %50, %46 : vector<32x256xi1>, vector<32x256xf32>
    %c31_i32 = arith.constant 31 : i32
    %52 = vector.broadcast %c31_i32 : i32 to vector<32x1xi32>
    %53 = arith.cmpi eq, %4, %52 : vector<32x1xi32>
    %54 = vector.extract_strided_slice %42 {offsets = [1, 0], sizes = [1, 256], strides = [1, 1]} : vector<2x256xf32> to vector<1x256xf32>
    %c31_i32_14 = arith.constant 31 : i32
    %55 = tpu.dynamic_rotate %30 by %c31_i32_14 dim 0 : vector<32x256xf32>, i32 -> vector<32x256xf32>
    %56 = vector.shape_cast %53 : vector<32x1xi1> to vector<32x1xi1>
    %57 = vector.broadcast %56 : vector<32x1xi1> to vector<32x256xi1>
    %58 = vector.shape_cast %54 : vector<1x256xf32> to vector<1x256xf32>
    %59 = vector.broadcast %58 : vector<1x256xf32> to vector<32x256xf32>
    %60 = arith.select %57, %59, %55 : vector<32x256xi1>, vector<32x256xf32>
    %61 = arith.maximumf %51, %60 : vector<32x256xf32>
    %62 = arith.maximumf %30, %61 : vector<32x256xf32>
    %63 = arith.cmpf oeq, %13, %62 : vector<32x256xf32>
    %cst_15 = arith.constant 0.699999988 : f32
    %64 = vector.broadcast %cst_15 : f32 to vector<32x256xf32>
    %65 = arith.cmpf oge, %13, %64 : vector<32x256xf32>
    %66 = arith.andi %63, %65 : vector<32x256xi1>
    %67 = arith.extui %66 : vector<32x256xi1> to vector<32x256xi8>
    %c0_16 = arith.constant 0 : index
    %c0_17 = arith.constant 0 : index
    %68 = vector.load %arg4[%c0_16, %c0_17] : memref<32x256xi8, #tpu.memory_space<vmem>>, vector<32x256xi8>
    tpu.vector_store %arg4[%c0_16, %c0_17], %67 {strides = array<i32>} : memref<32x256xi8, #tpu.memory_space<vmem>>, vector<32x256xi8>,
    %69 = arith.mulf %1, %13 : vector<32x256xf32>
    %c0_18 = arith.constant 0 : index
    %c0_19 = arith.constant 0 : index
    %70 = vector.load %arg5[%c0_18, %c0_19] : memref<32x256xf32, #tpu.memory_space<vmem>>, vector<32x256xf32>
    tpu.vector_store %arg5[%c0_18, %c0_19], %69 {strides = array<i32>} : memref<32x256xf32, #tpu.memory_space<vmem>>, vector<32x256xf32>,
    return
  }
  func.func @transform_0(%arg0: i32) -> (i32, i32, i32) {
    %c0_i32 = arith.constant 0 : i32
    %c0_i32_0 = arith.constant 0 : i32
    %c0_i32_1 = arith.constant 0 : i32
    return %arg0, %c0_i32, %c0_i32_0 : i32, i32, i32
  }
  func.func @transform_1(%arg0: i32) -> (i32, i32) {
    %c0_i32 = arith.constant 0 : i32
    %c0_i32_0 = arith.constant 0 : i32
    return %arg0, %c0_i32 : i32, i32
  }
  func.func @transform_2(%arg0: i32) -> (i32, i32) {
    %c0_i32 = arith.constant 0 : i32
    %c0_i32_0 = arith.constant 0 : i32
    return %arg0, %c0_i32 : i32, i32
  }
  func.func @transform_3(%arg0: i32) -> (i32, i32) {
    %c0_i32 = arith.constant 0 : i32
    %c0_i32_0 = arith.constant 0 : i32
    return %arg0, %c0_i32 : i32, i32
  }
  func.func @transform_4(%arg0: i32) -> (i32, i32) {
    %c0_i32 = arith.constant 0 : i32
    %c0_i32_0 = arith.constant 0 : i32
    return %arg0, %c0_i32 : i32, i32
  }
}

</mosaic_0001>

<llo_original>
// kernel: nms_and_scores.1
$region0: #{nms_and_scores.1}
  #allocation0 [shape = 'u32[]', space=smem, size = 0x4, offset = 0x4, fixed_abs, tag = 'smem constant byte address 0x4 - core index']
  #allocation1 [shape = 'u32[144,128]{1,0:T(1,128)}', space=vmem, size = 0x12000, scoped, tag = 'internal scratch']
  %s0 = inlined_call_operand.vmem [shape: f32[2,2,256], index: 0, kind: input, shape index: {}]
  %s1 = inlined_call_operand.hbm [shape: f32[40,200], index: 1, kind: input, shape index: {}]
  %s2 = inlined_call_operand.vmem [shape: f32[40,200], index: 2, kind: input, shape index: {}]
  %s3 = inlined_call_operand.hbm [shape: s8[40,200], index: 3, kind: output, shape index: {0}]
  %s4 = inlined_call_operand.hbm [shape: f32[40,200], index: 4, kind: output, shape index: {1}]
  %5 = xla_tuple %s3, %s4
  %s6 = sld [smem:[#allocation0]]
  $region57: #{nms_and_scores.1} parent=0
    _
  %s8 = ssub.s32 1, %s6
  %s9 = scalar_select 0, %s8, %s6
  $region1: #{nms_and_scores.1} parent=0
    #allocation2 [shape = 'u8[65536]{0}', space=vmem, size = 0x10000, scoped, tag = 'input window, operand 1']
    #allocation3 [shape = 's32[2]{0}', space=sflag, size = 0x8, scoped, tag = 'scoped memory for nms_and_scores.1']
    #allocation4 [shape = 's32[2]{0}', space=sflag, size = 0x8, scoped, tag = 'scoped memory for nms_and_scores.1']
    #allocation5 [shape = 'u8[16384]{0}', space=vmem, size = 0x4000, scoped, tag = 'output window, operand 0']
    #allocation6 [shape = 'u8[65536]{0}', space=vmem, size = 0x10000, scoped, tag = 'output window, operand 1']
    #allocation7 [shape = 's32[2]{0}', space=sflag, size = 0x8, scoped, tag = 'scoped memory for nms_and_scores.1']
    %10 = vsyncpa [#allocation3], 0
    %s11 = scalar_lea.sflag [#allocation3], 1
    %12 = vsyncpa %s11, 0
    %13 = vsyncpa [#allocation4], 0
    %s14 = scalar_lea.sflag [#allocation4], 1
    %15 = vsyncpa %s14, 0
    %16 = vsyncpa [#allocation7], 0
    %s17 = scalar_lea.sflag [#allocation7], 1
    %18 = vsyncpa %s17, 0
    loop: start=0, step=1, limit=4
    $region2: #{nms_and_scores.1} parent=1 // loop_pre_header
      _
    $region3: #{nms_and_scores.1} parent=1 // loop_header
      %s20 = sphi 0, %s24
      %p21 = scmp.ge.s32.totalorder %s20, 4
      %s30 = sphi 0, %s32
      %s33 = sphi 0, %s30
      %s34 = sphi 0, %s33
      %s50 = sphi 0, %s34
      %s56 = sphi 0, %s58
      %s59 = sphi 0, %s56
      %s60 = sphi 0, %s59
      %s76 = sphi 0, %s60
      %s82 = sphi 0, %s84
      %s85 = sphi 0, %s82
      %s86 = sphi 0, %s85
      %s102 = sphi 0, %s86
      %s108 = sphi 0, %s110
      %s111 = sphi 0, %s108
      %s112 = sphi 0, %s111
      %s128 = sphi 0, %s112
      %s134 = sphi 0, %s136
      %s137 = sphi 0, %s134
      %s138 = sphi 0, %s137
      %s154 = sphi 0, %s138
    $region4: #{nms_and_scores.1} parent=1 // loop_header_branch
      %23 = sbr.rel (%p21) target = $region8
    $region5: #{nms_and_scores.1} parent=1 // loop_body
      %s25 = ssub.s32 %s20, 1
      %s26 = ssub.s32 %s20, 2
      %s27 = sadd.s32 %s20, 1
      %s28 = ssub.s32 %s20, %s27
      %p29 = scmp.eq.s32.totalorder %s28, 0
      %s31 = sadd.s32 %s30, 1
      %s32 = scalar_select %p29, %s30, %s31
      %p35 = pneg %p29
      %p36 = scmp.eq.s32.totalorder %s20, 1
      %p37 = por %p35, %p36
      %p38 = scmp.ne.s32.totalorder %s30, %s33
      %p39 = scmp.eq.s32.totalorder %s20, 0
      %p40 = por %p38, %p39
      %p41 = scmp.ne.s32.totalorder %s30, %s33
      %p42 = scmp.eq.s32.totalorder %s25, 1
      %p43 = por %p41, %p42
      %p44 = scmp.ne.s32.totalorder %s33, %s34
      %p45 = scmp.eq.s32.totalorder %s25, 0
      %p46 = por %p44, %p45
      %p47 = scmp.ne.s32.totalorder %s33, %s34
      %p48 = scmp.eq.s32.totalorder %s26, 1
      %p49 = por %p47, %p48
      %p51 = scmp.ne.s32.totalorder %s34, %s50
      %p52 = scmp.eq.s32.totalorder %s26, 0
      %p53 = por %p51, %p52
      %s54 = ssub.s32 %s20, %s27
      %p55 = scmp.eq.s32.totalorder %s54, 0
      %s57 = sadd.s32 %s56, 1
      %s58 = scalar_select %p55, %s56, %s57
      %p61 = pneg %p55
      %p62 = scmp.eq.s32.totalorder %s20, 1
      %p63 = por %p61, %p62
      %p64 = scmp.ne.s32.totalorder %s56, %s59
      %p65 = scmp.eq.s32.totalorder %s20, 0
      %p66 = por %p64, %p65
      %p67 = scmp.ne.s32.totalorder %s56, %s59
      %p68 = scmp.eq.s32.totalorder %s25, 1
      %p69 = por %p67, %p68
      %p70 = scmp.ne.s32.totalorder %s59, %s60
      %p71 = scmp.eq.s32.totalorder %s25, 0
      %p72 = por %p70, %p71
      %p73 = scmp.ne.s32.totalorder %s59, %s60
      %p74 = scmp.eq.s32.totalorder %s26, 1
      %p75 = por %p73, %p74
      %p77 = scmp.ne.s32.totalorder %s60, %s76
      %p78 = scmp.eq.s32.totalorder %s26, 0
      %p79 = por %p77, %p78
      %s80 = ssub.s32 %s20, %s27
      %p81 = scmp.eq.s32.totalorder %s80, 0
      %s83 = sadd.s32 %s82, 1
      %s84 = scalar_select %p81, %s82, %s83
      %p87 = pneg %p81
      %p88 = scmp.eq.s32.totalorder %s20, 1
      %p89 = por %p87, %p88
      %p90 = scmp.ne.s32.totalorder %s82, %s85
      %p91 = scmp.eq.s32.totalorder %s20, 0
      %p92 = por %p90, %p91
      %p93 = scmp.ne.s32.totalorder %s82, %s85
      %p94 = scmp.eq.s32.totalorder %s25, 1
      %p95 = por %p93, %p94
      %p96 = scmp.ne.s32.totalorder %s85, %s86
      %p97 = scmp.eq.s32.totalorder %s25, 0
      %p98 = por %p96, %p97
      %p99 = scmp.ne.s32.totalorder %s85, %s86
      %p100 = scmp.eq.s32.totalorder %s26, 1
      %p101 = por %p99, %p100
      %p103 = scmp.ne.s32.totalorder %s86, %s102
      %p104 = scmp.eq.s32.totalorder %s26, 0
      %p105 = por %p103, %p104
      %s106 = ssub.s32 %s20, %s27
      %p107 = scmp.eq.s32.totalorder %s106, 0
      %s109 = sadd.s32 %s108, 1
      %s110 = scalar_select %p107, %s108, %s109
      %p113 = pneg %p107
      %p114 = scmp.eq.s32.totalorder %s20, 1
      %p115 = por %p113, %p114
      %p116 = scmp.ne.s32.totalorder %s108, %s111
      %p117 = scmp.eq.s32.totalorder %s20, 0
      %p118 = por %p116, %p117
      %p119 = scmp.ne.s32.totalorder %s108, %s111
      %p120 = scmp.eq.s32.totalorder %s25, 1
      %p121 = por %p119, %p120
      %p122 = scmp.ne.s32.totalorder %s111, %s112
      %p123 = scmp.eq.s32.totalorder %s25, 0
      %p124 = por %p122, %p123
      %p125 = scmp.ne.s32.totalorder %s111, %s112
      %p126 = scmp.eq.s32.totalorder %s26, 1
      %p127 = por %p125, %p126
      %p129 = scmp.ne.s32.totalorder %s112, %s128
      %p130 = scmp.eq.s32.totalorder %s26, 0
      %p131 = por %p129, %p130
      %s132 = ssub.s32 %s20, %s27
      %p133 = scmp.eq.s32.totalorder %s132, 0
      %s135 = sadd.s32 %s134, 1
      %s136 = scalar_select %p133, %s134, %s135
      %p139 = pneg %p133
      %p140 = scmp.eq.s32.totalorder %s20, 1
      %p141 = por %p139, %p140
      %p142 = scmp.ne.s32.totalorder %s134, %s137
      %p143 = scmp.eq.s32.totalorder %s20, 0
      %p144 = por %p142, %p143
      %p145 = scmp.ne.s32.totalorder %s134, %s137
      %p146 = scmp.eq.s32.totalorder %s25, 1
      %p147 = por %p145, %p146
      %p148 = scmp.ne.s32.totalorder %s137, %s138
      %p149 = scmp.eq.s32.totalorder %s25, 0
      %p150 = por %p148, %p149
      %p151 = scmp.ne.s32.totalorder %s137, %s138
      %p152 = scmp.eq.s32.totalorder %s26, 1
      %p153 = por %p151, %p152
      %p155 = scmp.ne.s32.totalorder %s138, %s154
      %p156 = scmp.eq.s32.totalorder %s26, 0
      %p157 = por %p155, %p156
      %p158 = scmp.le.s32.totalorder 1, %s20
      %p159 = scmp.lt.s32.totalorder %s20, 3
      %p160 = pnand %p158, %p159
      %p161 = pneg %p160
      // Predicated region
      $region9: #{nms_and_scores.1} parent=5 // pred_check
        _
      $region10: #{nms_and_scores.1} parent=5 // pred_check_branch
        %163 = sbr.rel (%p160) target = $region12
      $region11: #{nms_and_scores.1} parent=5 // pred_region
        %s164 = ssub.s32 %s20, 1
      $region12: #{nms_and_scores.1} parent=5 // pred_fallthru
        _
      %p165 = scmp.lt.s32.totalorder %s20, 2
      // Predicated region
      $region13: #{nms_and_scores.1} parent=5 // pred_check
        %p166 = pneg %p165
      $region14: #{nms_and_scores.1} parent=5 // pred_check_branch
        %168 = sbr.rel (%p166) target = $region16
      $region15: #{nms_and_scores.1} parent=5 // pred_region
        // Predicated region
        $region17: #{nms_and_scores.1} parent=15 // pred_check
          %p169 = pneg %p40
        $region18: #{nms_and_scores.1} parent=15 // pred_check_branch
          %171 = sbr.rel (%p169) target = $region20
        $region19: #{nms_and_scores.1} parent=15 // pred_region
          %p172 = scmp.lt.s32.totalorder %s20, 1
          %s173 = scalar_select %p172, %s20, 1
          %s174 = smul.addr %s173, 2
          %s175 = smul.addr %s174, 2
          %s176 = scalar_lea.vmem %s0, %s175
        $region20: #{nms_and_scores.1} parent=15 // pred_fallthru
          _
        // Predicated region
        $region21: #{nms_and_scores.1} parent=15 // pred_check
          %p177 = pneg %p66
        $region22: #{nms_and_scores.1} parent=15 // pred_check_branch
          %179 = sbr.rel (%p177) target = $region24
        $region23: #{nms_and_scores.1} parent=15 // pred_region
          %s180 = sand.u32 %s56, 1
          %s181 = scalar_lea.sflag [#allocation3], %s180
          %s182 = sand.u32 %s56, 1
          %s183 = smul.addr %s182, 64
          %s184 = scalar_lea.vmem [#allocation2], %s183
          %s185 = smul.u32 4, %s20
          %s186 = ssub.s32 5, %s185
          %p187 = scmp.lt.s32.totalorder %s186, 4
          %s188 = scalar_select %p187, %s186, 4
          %s189 = smul.u32 128, %s188
          %s190 = smul.u32 %s189, 2
          %s192 = ssub.s32 1024, %s190
          %193 = vsyncadd %s181, %s192
          %p194 = scmp.ne.s32.totalorder 0, %s190
          %s195 = smul.addr %s185, 2
          %s196 = smul.addr %s195, 128
          %s197 = scalar_lea.hbm %s1, %s196
          %s198 = smul.u32 16, %s188
          %s199 = sshll.u32 %s184, 4
          %s200 = int_to_ptr.vmem [resolvable:$true] %s199
          %s201 = sshll.u32 %s198, 4
          %205 = dma.hbm_to_vmem [thread:$0]  (%p194), %s197, %s201, %s200, %s181, 256, 256, 16
        $region24: #{nms_and_scores.1} parent=15 // pred_fallthru
          _
        // Predicated region
        $region25: #{nms_and_scores.1} parent=15 // pred_check
          %p206 = pneg %p92
        $region26: #{nms_and_scores.1} parent=15 // pred_check_branch
          %208 = sbr.rel (%p206) target = $region28
        $region27: #{nms_and_scores.1} parent=15 // pred_region
          %s209 = smul.u32 4, %s20
          %s210 = ssub.s32 5, %s209
          %p211 = scmp.lt.s32.totalorder %s210, 4
          %s212 = scalar_select %p211, %s210, 4
          %s213 = smul.u32 128, %s212
          %s214 = smul.u32 %s213, 2
          %p215 = scmp.lt.s32.totalorder %s209, 4
          %s216 = scalar_select %p215, %s209, 4
          %s217 = smul.addr %s216, 2
          %s218 = smul.addr %s217, 8
          %s219 = scalar_lea.vmem %s2, %s218
          %s220 = smul.u32 4, %s20
          %s221 = ssub.s32 5, %s220
          %p222 = scmp.lt.s32.totalorder %s221, 4
          %s223 = scalar_select %p222, %s221, 4
          %s224 = smul.u32 128, %s223
          %s225 = smul.u32 %s224, 2
        $region28: #{nms_and_scores.1} parent=15 // pred_fallthru
          _
      $region16: #{nms_and_scores.1} parent=5 // pred_fallthru
        _
      %p226 = scmp.le.s32.totalorder 1, %s20
      %p227 = scmp.lt.s32.totalorder %s20, 3
      %p228 = pnand %p226, %p227
      %p229 = pneg %p228
      // Predicated region
      $region29: #{nms_and_scores.1} parent=5 // pred_check
        _
      $region30: #{nms_and_scores.1} parent=5 // pred_check_branch
        %231 = sbr.rel (%p228) target = $region32
      $region31: #{nms_and_scores.1} parent=5 // pred_region
        %s232 = ssub.s32 %s20, 1
        %s233 = sand.u32 %s59, 1
        %s234 = scalar_lea.sflag [#allocation3], %s233
        %s235 = sand.u32 %s59, 1
        %s236 = smul.addr %s235, 64
        %s237 = scalar_lea.vmem [#allocation2], %s236
        // Predicated region
        $region33: #{nms_and_scores.1} parent=31 // pred_check
          %p238 = pneg %p72
        $region34: #{nms_and_scores.1} parent=31 // pred_check_branch
          %240 = sbr.rel (%p238) target = $region36
        $region35: #{nms_and_scores.1} parent=31 // pred_region
          %241 = dma.done %s234, 1024
        $region36: #{nms_and_scores.1} parent=31 // pred_fallthru
          _
        %p242 = scmp.lt.s32.totalorder %s25, 1
        %s243 = scalar_select %p242, %s25, 1
        %s244 = smul.addr %s243, 2
        %s245 = smul.addr %s244, 2
        %s246 = scalar_lea.vmem %s0, %s245
        %p247 = pneg %p46
        %p248 = pneg %p43
        %s249 = sand.u32 %s59, 1
        %s250 = scalar_lea.sflag [#allocation3], %s249
        %s251 = sand.u32 %s59, 1
        %s252 = smul.addr %s251, 64
        %s253 = scalar_lea.vmem [#allocation2], %s252
        %p254 = pneg %p72
        %p255 = pneg %p69
        %s256 = smul.u32 4, %s25
        %s257 = ssub.s32 5, %s256
        %p258 = scmp.lt.s32.totalorder %s257, 4
        %s259 = scalar_select %p258, %s257, 4
        %s260 = smul.u32 128, %s259
        %s261 = smul.u32 %s260, 2
        %p262 = scmp.lt.s32.totalorder %s256, 4
        %s263 = scalar_select %p262, %s256, 4
        %s264 = smul.addr %s263, 2
        %s265 = smul.addr %s264, 8
        %s266 = scalar_lea.vmem %s2, %s265
        %p267 = pneg %p98
        %p268 = pneg %p95
        %p269 = pneg %p124
        %p270 = pneg %p121
        %s271 = sand.u32 %s111, 1
        %s272 = scalar_lea.sflag [#allocation4], %s271
        %s273 = sand.u32 %s111, 1
        %s274 = smul.addr %s273, 16
        %s275 = scalar_lea.vmem [#allocation5], %s274
        %p276 = pneg %p150
        %p277 = pneg %p147
        %s278 = sand.u32 %s137, 1
        %s279 = scalar_lea.sflag [#allocation7], %s278
        %s280 = sand.u32 %s137, 1
        %s281 = smul.addr %s280, 64
        %s282 = scalar_lea.vmem [#allocation6], %s281
        %p283 = scmp.lt.s32.totalorder %s25, 1
        %s284 = scalar_select %p283, %s25, 1
        %s285 = smul.addr %s284, 2
        %s286 = smul.addr %s285, 2
        %s287 = scalar_lea.vmem %s0, %s286
        %s288 = smul.u32 4, %s25
        %s289 = ssub.s32 5, %s288
        %p290 = scmp.lt.s32.totalorder %s289, 4
        %s291 = scalar_select %p290, %s289, 4
        %s292 = smul.u32 128, %s291
        %s293 = smul.u32 %s292, 2
        %s294 = smul.u32 4, %s25
        %s295 = ssub.s32 5, %s294
        %p296 = scmp.lt.s32.totalorder %s295, 4
        %s297 = scalar_select %p296, %s295, 4
        %s298 = smul.u32 128, %s297
        %s299 = smul.u32 %s298, 2
        %p300 = scmp.lt.s32.totalorder %s294, 4
        %s301 = scalar_select %p300, %s294, 4
        %s302 = smul.addr %s301, 2
        %s303 = smul.addr %s302, 8
        %s304 = scalar_lea.vmem %s2, %s303
        %s305 = smul.u32 4, %s25
        %s306 = ssub.s32 5, %s305
        %p307 = scmp.lt.s32.totalorder %s306, 4
        %s308 = scalar_select %p307, %s306, 4
        %s309 = smul.u32 128, %s308
        %s310 = smul.u32 %s309, 2
        %s311 = smul.u32 4, %s25
        %s312 = ssub.s32 5, %s311
        %p313 = scmp.lt.s32.totalorder %s312, 4
        %s314 = scalar_select %p313, %s312, 4
        %s315 = smul.u32 32, %s314
        %s316 = smul.u32 %s315, 2
        %s317 = smul.u32 4, %s25
        %s318 = ssub.s32 5, %s317
        %p319 = scmp.lt.s32.totalorder %s318, 4
        %s320 = scalar_select %p319, %s318, 4
        %s321 = smul.u32 128, %s320
        %s322 = smul.u32 %s321, 2
        %v325 = vld [vmem:[%s304] sm:$0xff]
        %v326 = vld [vmem:[%s304 + $0x8] sm:$0xff]
        %v327 = vld [vmem:[%s304 + $0x10] sm:$0xff]
        %v328 = vld [vmem:[%s304 + $0x18] sm:$0xff]
        %v329 = vld [vmem:[%s304 + $0x20] sm:$0xff]
        %v330 = vld [vmem:[%s304 + $0x28] sm:$0xff]
        %v331 = vld [vmem:[%s304 + $0x30] sm:$0xff]
        %v332 = vld [vmem:[%s304 + $0x38] sm:$0xff]
        %v333 = vld [vmem:[%s237] sm:$0xff]
        %v334 = vld [vmem:[%s237 + $0x8] sm:$0xff]
        %v335 = vld [vmem:[%s237 + $0x10] sm:$0xff]
        %v336 = vld [vmem:[%s237 + $0x18] sm:$0xff]
        %v337 = vld [vmem:[%s237 + $0x20] sm:$0xff]
        %v338 = vld [vmem:[%s237 + $0x28] sm:$0xff]
        %v339 = vld [vmem:[%s237 + $0x30] sm:$0xff]
        %v340 = vld [vmem:[%s237 + $0x38] sm:$0xff]
        %v341 = vld [vmem:[%s287] sm:$0xf]
        %v342 = vlaneseq
        %v343 = vshrl.u32 %v342, 7
        %v344 = vadd.s32 %v343, 8
        %v345 = vadd.s32 %v343, 16
        %v346 = vadd.s32 %v343, 24
        %s347 = smul.u32 %s25, 32
        %v348 = vstv %s347
        %v349 = vadd.s32 %v343, %v348
        %v350 = vadd.s32 %v344, %v348
        %v351 = vadd.s32 %v345, %v348
        %v352 = vadd.s32 %v346, %v348
        %vm353 = vcmp.lt.s32.totalorder %v349, 40
        %vm354 = vcmp.lt.s32.totalorder %v350, 40
        %vm355 = vcmp.lt.s32.totalorder %v351, 40
        %vm356 = vcmp.lt.s32.totalorder %v352, 40
        %v357 = vsel %vm353, 1, 0
        %v358 = vsel %vm354, 1, 0
        %v359 = vsel %vm355, 1, 0
        %v360 = vsel %vm356, 1, 0
        %vm361 = vcmp.eq.s32.totalorder %v357, 1
        %vm362 = vcmp.eq.s32.totalorder %v358, 1
        %vm363 = vcmp.eq.s32.totalorder %v359, 1
        %vm364 = vcmp.eq.s32.totalorder %v360, 1
        %v365 = vsel %vm361, %v325, -inf
        %v366 = vsel %vm361, %v326, -inf
        %v367 = vsel %vm362, %v327, -inf
        %v368 = vsel %vm362, %v328, -inf
        %v369 = vsel %vm363, %v329, -inf
        %v370 = vsel %vm363, %v330, -inf
        %v371 = vsel %vm364, %v331, -inf
        %v372 = vsel %vm364, %v332, -inf
        %v373 = vlaneseq
        %v374 = vand.u32 %v373, 127
        %v375 = vadd.s32 %v374, 128
        %vm376 = vcmp.ge.s32.totalorder %v374, 1
        %vm377 = vcmp.ge.s32.totalorder %v375, 1
        %vm378 = vcmp.le.s32.totalorder %v374, 198
        %vm379 = vcmp.le.s32.totalorder %v375, 198
        %380 = vrot.lane.b32.xlu0 %v365, 1
        %v381 = vpop.permute.xlu0 %380
        %382 = vrot.lane.b32.xlu0 %v367, 1
        %v383 = vpop.permute.xlu0 %382
        %384 = vrot.lane.b32.xlu0 %v369, 1
        %v385 = vpop.permute.xlu0 %384
        %386 = vrot.lane.b32.xlu0 %v371, 1
        %v387 = vpop.permute.xlu0 %386
        %388 = vrot.lane.b32.xlu0 %v366, 1
        %v389 = vpop.permute.xlu0 %388
        %390 = vrot.lane.b32.xlu0 %v368, 1
        %v391 = vpop.permute.xlu0 %390
        %392 = vrot.lane.b32.xlu0 %v370, 1
        %v393 = vpop.permute.xlu0 %392
        %394 = vrot.lane.b32.xlu0 %v372, 1
        %v395 = vpop.permute.xlu0 %394
        %vm396 = vcmp.lt.s32.totalorder %v374, 1
        %v397 = vsel %vm396, %v381, %v389
        %v398 = vsel %vm396, %v383, %v391
        %v399 = vsel %vm396, %v385, %v393
        %v400 = vsel %vm396, %v387, %v395
        %v401 = vsel %vm396, %v389, %v381
        %v402 = vsel %vm396, %v391, %v383
        %v403 = vsel %vm396, %v393, %v385
        %v404 = vsel %vm396, %v395, %v387
        %v405 = vsel %vm376, 1, 0
        %v406 = vsel %vm377, 1, 0
        %vm407 = vcmp.eq.s32.totalorder %v405, 1
        %vm408 = vcmp.eq.s32.totalorder %v406, 1
        %v409 = vsel %vm407, %v401, -inf
        %v410 = vsel %vm408, %v397, -inf
        %v411 = vsel %vm407, %v402, -inf
        %v412 = vsel %vm408, %v398, -inf
        %v413 = vsel %vm407, %v403, -inf
        %v414 = vsel %vm408, %v399, -inf
        %v415 = vsel %vm407, %v404, -inf
        %v416 = vsel %vm408, %v400, -inf
        %417 = vrot.lane.b32.xlu0 %v365, 127
        %v418 = vpop.permute.xlu0 %417
        %419 = vrot.lane.b32.xlu0 %v367, 127
        %v420 = vpop.permute.xlu0 %419
        %421 = vrot.lane.b32.xlu0 %v369, 127
        %v422 = vpop.permute.xlu0 %421
        %423 = vrot.lane.b32.xlu0 %v371, 127
        %v424 = vpop.permute.xlu0 %423
        %425 = vrot.lane.b32.xlu0 %v366, 127
        %v426 = vpop.permute.xlu0 %425
        %427 = vrot.lane.b32.xlu0 %v368, 127
        %v428 = vpop.permute.xlu0 %427
        %429 = vrot.lane.b32.xlu0 %v370, 127
        %v430 = vpop.permute.xlu0 %429
        %431 = vrot.lane.b32.xlu0 %v372, 127
        %v432 = vpop.permute.xlu0 %431
        %vm433 = vcmp.lt.s32.totalorder %v374, 127
        %v434 = vsel %vm433, %v418, %v426
        %v435 = vsel %vm433, %v420, %v428
        %v436 = vsel %vm433, %v422, %v430
        %v437 = vsel %vm433, %v424, %v432
        %v438 = vsel %vm433, %v426, %v418
        %v439 = vsel %vm433, %v428, %v420
        %v440 = vsel %vm433, %v430, %v422
        %v441 = vsel %vm433, %v432, %v424
        %v442 = vsel %vm378, 1, 0
        %v443 = vsel %vm379, 1, 0
        %vm444 = vcmp.eq.s32.totalorder %v442, 1
        %vm445 = vcmp.eq.s32.totalorder %v443, 1
        %v446 = vsel %vm444, %v434, -inf
        %v447 = vsel %vm445, %v438, -inf
        %v448 = vsel %vm444, %v435, -inf
        %v449 = vsel %vm445, %v439, -inf
        %v450 = vsel %vm444, %v436, -inf
        %v451 = vsel %vm445, %v440, -inf
        %v452 = vsel %vm444, %v437, -inf
        %v453 = vsel %vm445, %v441, -inf
        %v454 = vmax.f32 %v409, %v446
        %v455 = vmax.f32 %v410, %v447
        %v456 = vmax.f32 %v411, %v448
        %v457 = vmax.f32 %v412, %v449
        %v458 = vmax.f32 %v413, %v450
        %v459 = vmax.f32 %v414, %v451
        %v460 = vmax.f32 %v415, %v452
        %v461 = vmax.f32 %v416, %v453
        %v462 = vmax.f32 %v365, %v454
        %v463 = vmax.f32 %v366, %v455
        %v464 = vmax.f32 %v367, %v456
        %v465 = vmax.f32 %v368, %v457
        %v466 = vmax.f32 %v369, %v458
        %v467 = vmax.f32 %v370, %v459
        %v468 = vmax.f32 %v371, %v460
        %v469 = vmax.f32 %v372, %v461
        %v472 = vunpack.c.l.s4 1983009808
        %v473 = vunpack.c.0.s8 %v472
        %v474 = vlaneseq
        %v475 = vshrl.u32 %v474, 7
        %v476 = vsub.s32 %v473, %v475
        %v477 = vrot.slane %v341, %v476
        %v478 = vcombine.high %v477, %v477
        %481 = vrot.lane.b32.xlu0 %v477, 1
        %v482 = vpop.permute.xlu0 %481
        %483 = vrot.lane.b32.xlu0 %v478, 1
        %v484 = vpop.permute.xlu0 %483
        %v485 = vsel %vm396, %v482, %v484
        %v486 = vsel %vm396, %v484, %v482
        %v487 = vsel %vm407, %v486, -inf
        %v488 = vsel %vm408, %v485, -inf
        %489 = vrot.lane.b32.xlu0 %v477, 127
        %v490 = vpop.permute.xlu0 %489
        %491 = vrot.lane.b32.xlu0 %v478, 127
        %v492 = vpop.permute.xlu0 %491
        %v493 = vsel %vm433, %v490, %v492
        %v494 = vsel %vm433, %v492, %v490
        %v495 = vsel %vm444, %v493, -inf
        %v496 = vsel %vm445, %v494, -inf
        %v497 = vmax.f32 %v487, %v495
        %v498 = vmax.f32 %v488, %v496
        %v501 = vcombine.low %v497, %v498
        %v503 = vunpack.c.l.s4 1983009808
        %v504 = vunpack.c.0.s8 %v503
        %v505 = vlaneseq
        %v506 = vshrl.u32 %v505, 7
        %v507 = vsub.s32 %v504, %v506
        %v508 = vrot.slane %v501, %v507
        %v510 = vmax.f32 %v341, %v508
        %vm511 = vcmp.eq.s32.totalorder %v343, 0
        %vm512 = vcmp.eq.s32.totalorder %v344, 0
        %vm513 = vcmp.eq.s32.totalorder %v345, 0
        %vm514 = vcmp.eq.s32.totalorder %v346, 0
        %v515 = vrot.slane %v462, 7
        %v516 = vrot.slane %v463, 7
        %v517 = vrot.slane %v464, 7
        %v518 = vrot.slane %v465, 7
        %v519 = vrot.slane %v466, 7
        %v520 = vrot.slane %v467, 7
        %v521 = vrot.slane %v468, 7
        %v522 = vrot.slane %v469, 7
        %vm523 = vcmp.lt.s32.totalorder %v343, 1
        %v524 = vsel %vm523, %v519, %v521
        %v525 = vsel %vm523, %v520, %v522
        %v526 = vsel %vm523, %v517, %v519
        %v527 = vsel %vm523, %v518, %v520
        %v528 = vsel %vm523, %v515, %v517
        %v529 = vsel %vm523, %v516, %v518
        %v530 = vsel %vm523, %v521, %v515
        %v531 = vsel %vm523, %v522, %v516
        %v532 = vsel %vm511, 1, 0
        %v533 = vsel %vm512, 1, 0
        %v534 = vsel %vm513, 1, 0
        %v535 = vsel %vm514, 1, 0
        %vm536 = vcmp.eq.s32.totalorder %v532, 1
        %vm537 = vcmp.eq.s32.totalorder %v533, 1
        %vm538 = vcmp.eq.s32.totalorder %v534, 1
        %vm539 = vcmp.eq.s32.totalorder %v535, 1
        %v541 = vlaneseq
        %v542 = vshrl.u32 %v541, 7
        %v543 = vsub.s32 0, %v542
        %v544 = vrot.slane %v510, %v543
        %v545 = vlaneseq
        %v546 = vshrl.u32 %v545, 7
        %v547 = vsub.s32 2, %v546
        %v548 = vrot.slane %v510, %v547
        %v551 = vlaneseq
        %v552 = vshrl.u32 %v551, 7
        %v553 = vsub.s32 0, %v552
        %v554 = vrot.slane %v544, %v553
        %v555 = vlaneseq
        %v556 = vshrl.u32 %v555, 7
        %v557 = vsub.s32 0, %v556
        %v558 = vrot.slane %v548, %v557
        %v559 = vsel %vm536, %v554, %v530
        %v560 = vsel %vm536, %v558, %v531
        %v561 = vsel %vm537, %v554, %v528
        %v562 = vsel %vm537, %v558, %v529
        %v563 = vsel %vm538, %v554, %v526
        %v564 = vsel %vm538, %v558, %v527
        %v565 = vsel %vm539, %v554, %v524
        %v566 = vsel %vm539, %v558, %v525
        %vm567 = vcmp.eq.s32.totalorder %v343, 31
        %vm568 = vcmp.eq.s32.totalorder %v344, 31
        %vm569 = vcmp.eq.s32.totalorder %v345, 31
        %vm570 = vcmp.eq.s32.totalorder %v346, 31
        %v571 = vrot.slane %v462, 1
        %v572 = vrot.slane %v463, 1
        %v573 = vrot.slane %v464, 1
        %v574 = vrot.slane %v465, 1
        %v575 = vrot.slane %v466, 1
        %v576 = vrot.slane %v467, 1
        %v577 = vrot.slane %v468, 1
        %v578 = vrot.slane %v469, 1
        %vm579 = vcmp.lt.s32.totalorder %v343, 7
        %v580 = vsel %vm579, %v575, %v577
        %v581 = vsel %vm579, %v576, %v578
        %v582 = vsel %vm579, %v573, %v575
        %v583 = vsel %vm579, %v574, %v576
        %v584 = vsel %vm579, %v571, %v573
        %v585 = vsel %vm579, %v572, %v574
        %v586 = vsel %vm579, %v577, %v571
        %v587 = vsel %vm579, %v578, %v572
        %v588 = vsel %vm567, 1, 0
        %v589 = vsel %vm568, 1, 0
        %v590 = vsel %vm569, 1, 0
        %v591 = vsel %vm570, 1, 0
        %vm592 = vcmp.eq.s32.totalorder %v588, 1
        %vm593 = vcmp.eq.s32.totalorder %v589, 1
        %vm594 = vcmp.eq.s32.totalorder %v590, 1
        %vm595 = vcmp.eq.s32.totalorder %v591, 1
        %v596 = vlaneseq
        %v597 = vshrl.u32 %v596, 7
        %v598 = vsub.s32 1, %v597
        %v599 = vrot.slane %v510, %v598
        %v600 = vlaneseq
        %v601 = vshrl.u32 %v600, 7
        %v602 = vsub.s32 3, %v601
        %v603 = vrot.slane %v510, %v602
        %v606 = vlaneseq
        %v607 = vshrl.u32 %v606, 7
        %v608 = vsub.s32 1, %v607
        %v609 = vrot.slane %v599, %v608
        %v610 = vlaneseq
        %v611 = vshrl.u32 %v610, 7
        %v612 = vsub.s32 1, %v611
        %v613 = vrot.slane %v603, %v612
        %v614 = vsel %vm592, %v609, %v584
        %v615 = vsel %vm592, %v613, %v585
        %v616 = vsel %vm593, %v609, %v582
        %v617 = vsel %vm593, %v613, %v583
        %v618 = vsel %vm594, %v609, %v580
        %v619 = vsel %vm594, %v613, %v581
        %v620 = vsel %vm595, %v609, %v586
        %v621 = vsel %vm595, %v613, %v587
        %v622 = vmax.f32 %v559, %v614
        %v623 = vmax.f32 %v560, %v615
        %v624 = vmax.f32 %v561, %v616
        %v625 = vmax.f32 %v562, %v617
        %v626 = vmax.f32 %v563, %v618
        %v627 = vmax.f32 %v564, %v619
        %v628 = vmax.f32 %v565, %v620
        %v629 = vmax.f32 %v566, %v621
        %v630 = vmax.f32 %v462, %v622
        %v631 = vmax.f32 %v463, %v623
        %v632 = vmax.f32 %v464, %v624
        %v633 = vmax.f32 %v465, %v625
        %v634 = vmax.f32 %v466, %v626
        %v635 = vmax.f32 %v467, %v627
        %v636 = vmax.f32 %v468, %v628
        %v637 = vmax.f32 %v469, %v629
        %vm638 = vcmp.eq.f32.partialorder %v365, %v630
        %vm639 = vcmp.eq.f32.partialorder %v366, %v631
        %vm640 = vcmp.eq.f32.partialorder %v367, %v632
        %vm641 = vcmp.eq.f32.partialorder %v368, %v633
        %vm642 = vcmp.eq.f32.partialorder %v369, %v634
        %vm643 = vcmp.eq.f32.partialorder %v370, %v635
        %vm644 = vcmp.eq.f32.partialorder %v371, %v636
        %vm645 = vcmp.eq.f32.partialorder %v372, %v637
        %vm646 = vcmp.ge.f32.partialorder %v365, 0.7
        %vm647 = vcmp.ge.f32.partialorder %v366, 0.7
        %vm648 = vcmp.ge.f32.partialorder %v367, 0.7
        %vm649 = vcmp.ge.f32.partialorder %v368, 0.7
        %vm650 = vcmp.ge.f32.partialorder %v369, 0.7
        %vm651 = vcmp.ge.f32.partialorder %v370, 0.7
        %vm652 = vcmp.ge.f32.partialorder %v371, 0.7
        %vm653 = vcmp.ge.f32.partialorder %v372, 0.7
        %vm654 = vmand %vm638, %vm646
        %vm655 = vmand %vm639, %vm647
        %vm656 = vmand %vm640, %vm648
        %vm657 = vmand %vm641, %vm649
        %vm658 = vmand %vm642, %vm650
        %vm659 = vmand %vm643, %vm651
        %vm660 = vmand %vm644, %vm652
        %vm661 = vmand %vm645, %vm653
        %vm662 = vmpackc.low %vm656, %vm654
        %vm663 = vmpackc.low %vm660, %vm658
        %vm664 = vmpackc.even %vm663, %vm662
        %vm665 = vmpackc.low %vm657, %vm655
        %vm666 = vmpackc.low %vm661, %vm659
        %vm667 = vmpackc.even %vm666, %vm665
        %v668 = vsel %vm664, 16843009, 0
        %v669 = vsel %vm667, 16843009, 0
        %v670 = vunpack.c.0.s8 %v668
        %v671 = vunpack.c.0.s8 %v669
        %v672 = vunpack.c.1.s8 %v668
        %v673 = vunpack.c.1.s8 %v669
        %v674 = vunpack.c.2.s8 %v668
        %v675 = vunpack.c.2.s8 %v669
        %v676 = vunpack.c.3.s8 %v668
        %v677 = vunpack.c.3.s8 %v669
        %v678 = vpack.c.b16 %v671, %v670
        %v679 = vpack.c.b8 %v678, %v678
        %v680 = vpack.c.b16 %v673, %v672
        %v681 = vpack.c.b8 %v680, %v680
        %v682 = vpack.c.b16 %v675, %v674
        %v683 = vpack.c.b8 %v682, %v682
        %v684 = vpack.c.b16 %v677, %v676
        %v685 = vpack.c.b8 %v684, %v684
        %686 = vst [vmem:[%s275] sm:$0xf] %v679
        %687 = vst [vmem:[%s275 + $0x4] sm:$0xf] %v681
        %688 = vst [vmem:[%s275 + $0x8] sm:$0xf] %v683
        %689 = vst [vmem:[%s275 + $0xc] sm:$0xf] %v685
        %v690 = vmul.f32 %v333, %v365
        %v691 = vmul.f32 %v334, %v366
        %v692 = vmul.f32 %v335, %v367
        %v693 = vmul.f32 %v336, %v368
        %v694 = vmul.f32 %v337, %v369
        %v695 = vmul.f32 %v338, %v370
        %v696 = vmul.f32 %v339, %v371
        %v697 = vmul.f32 %v340, %v372
        %698 = vst [vmem:[%s282] sm:$0xff] %v690
        %699 = vst [vmem:[%s282 + $0x8] sm:$0xff] %v691
        %700 = vst [vmem:[%s282 + $0x10] sm:$0xff] %v692
        %701 = vst [vmem:[%s282 + $0x18] sm:$0xff] %v693
        %702 = vst [vmem:[%s282 + $0x20] sm:$0xff] %v694
        %703 = vst [vmem:[%s282 + $0x28] sm:$0xff] %v695
        %704 = vst [vmem:[%s282 + $0x30] sm:$0xff] %v696
        %705 = vst [vmem:[%s282 + $0x38] sm:$0xff] %v697
        %s706 = sand.u32 %s111, 1
        %s707 = scalar_lea.sflag [#allocation4], %s706
        %s708 = sand.u32 %s111, 1
        %s709 = smul.addr %s708, 16
        %s710 = scalar_lea.vmem [#allocation5], %s709
        %s711 = sand.u32 %s137, 1
        %s712 = scalar_lea.sflag [#allocation7], %s711
        %s713 = sand.u32 %s137, 1
        %s714 = smul.addr %s713, 64
        %s715 = scalar_lea.vmem [#allocation6], %s714
        // Predicated region
        $region37: #{nms_and_scores.1} parent=31 // pred_check
          %p716 = pneg %p121
        $region38: #{nms_and_scores.1} parent=31 // pred_check_branch
          %718 = sbr.rel (%p716) target = $region40
        $region39: #{nms_and_scores.1} parent=31 // pred_region
          %s719 = smul.u32 4, %s25
          %s720 = ssub.s32 5, %s719
          %p721 = scmp.lt.s32.totalorder %s720, 4
          %s722 = scalar_select %p721, %s720, 4
          %s723 = smul.u32 32, %s722
          %s724 = smul.u32 %s723, 2
          %s726 = ssub.s32 256, %s724
          %727 = vsyncadd %s707, %s726
          %p728 = scmp.ne.s32.totalorder 0, %s724
          %s729 = smul.addr %s719, 2
          %s730 = smul.addr %s729, 32
          %s731 = scalar_lea.hbm %s3, %s730
          %s732 = smul.u32 4, %s722
          %s733 = sshll.u32 %s710, 4
          %s734 = int_to_ptr.vmem [resolvable:$true] %s733
          %s735 = sshll.u32 %s732, 4
          %739 = dma.vmem_to_hbm [thread:$0]  (%p728), %s734, %s735, %s731, %s707, 64, 64, 4
        $region40: #{nms_and_scores.1} parent=31 // pred_fallthru
          _
        // Predicated region
        $region41: #{nms_and_scores.1} parent=31 // pred_check
          %p740 = pneg %p147
        $region42: #{nms_and_scores.1} parent=31 // pred_check_branch
          %742 = sbr.rel (%p740) target = $region44
        $region43: #{nms_and_scores.1} parent=31 // pred_region
          %s743 = smul.u32 4, %s25
          %s744 = ssub.s32 5, %s743
          %p745 = scmp.lt.s32.totalorder %s744, 4
          %s746 = scalar_select %p745, %s744, 4
          %s747 = smul.u32 128, %s746
          %s748 = smul.u32 %s747, 2
          %s750 = ssub.s32 1024, %s748
          %751 = vsyncadd %s712, %s750
          %p752 = scmp.ne.s32.totalorder 0, %s748
          %s753 = smul.addr %s743, 2
          %s754 = smul.addr %s753, 128
          %s755 = scalar_lea.hbm %s4, %s754
          %s756 = smul.u32 16, %s746
          %s757 = sshll.u32 %s715, 4
          %s758 = int_to_ptr.vmem [resolvable:$true] %s757
          %s759 = sshll.u32 %s756, 4
          %763 = dma.vmem_to_hbm [thread:$0]  (%p752), %s758, %s759, %s755, %s712, 256, 256, 16
        $region44: #{nms_and_scores.1} parent=31 // pred_fallthru
          _
      $region32: #{nms_and_scores.1} parent=5 // pred_fallthru
        _
      %p764 = scmp.le.s32.totalorder 2, %s20
      // Predicated region
      $region45: #{nms_and_scores.1} parent=5 // pred_check
        %p765 = pneg %p764
      $region46: #{nms_and_scores.1} parent=5 // pred_check_branch
        %767 = sbr.rel (%p765) target = $region48
      $region47: #{nms_and_scores.1} parent=5 // pred_region
        %s768 = ssub.s32 %s20, 2
        // Predicated region
        $region49: #{nms_and_scores.1} parent=47 // pred_check
          %p769 = pneg %p127
        $region50: #{nms_and_scores.1} parent=47 // pred_check_branch
          %771 = sbr.rel (%p769) target = $region52
        $region51: #{nms_and_scores.1} parent=47 // pred_region
          %s772 = sand.u32 %s112, 1
          %s773 = scalar_lea.sflag [#allocation4], %s772
          %s774 = sand.u32 %s112, 1
          %s775 = smul.addr %s774, 16
          %s776 = scalar_lea.vmem [#allocation5], %s775
          %777 = dma.done %s773, 256
        $region52: #{nms_and_scores.1} parent=47 // pred_fallthru
          _
        // Predicated region
        $region53: #{nms_and_scores.1} parent=47 // pred_check
          %p778 = pneg %p153
        $region54: #{nms_and_scores.1} parent=47 // pred_check_branch
          %780 = sbr.rel (%p778) target = $region56
        $region55: #{nms_and_scores.1} parent=47 // pred_region
          %s781 = sand.u32 %s138, 1
          %s782 = scalar_lea.sflag [#allocation7], %s781
          %s783 = sand.u32 %s138, 1
          %s784 = smul.addr %s783, 64
          %s785 = scalar_lea.vmem [#allocation6], %s784
          %786 = dma.done %s782, 1024
        $region56: #{nms_and_scores.1} parent=47 // pred_fallthru
          _
      $region48: #{nms_and_scores.1} parent=5 // pred_fallthru
        _
    $region6: #{nms_and_scores.1} parent=1 // loop_footer
      %s24 = sadd.s32 1, %s20
    $region7: #{nms_and_scores.1} parent=1 // loop_footer_branch
      %19 = sbr.rel target = $region3
    $region8: #{nms_and_scores.1} parent=1 // loop_exit
      _
    %787 = vsyncpa [#allocation3], 1
    %s788 = scalar_lea.sflag [#allocation3], 1
    %789 = vsyncpa %s788, 1
    %790 = vsyncpa [#allocation4], 1
    %s791 = scalar_lea.sflag [#allocation4], 1
    %792 = vsyncpa %s791, 1
    %793 = vsyncpa [#allocation7], 1
    %s794 = scalar_lea.sflag [#allocation7], 1
    %795 = vsyncpa %s794, 1

</llo_original>
